<compile_context>
chip_gen: v6e
topology: v6e:2x2x1
jax: 0.10.0
libtpu: 0.0.40
codegen_flags: <defaults>
</compile_context>

<pallas_src>
import functools

import jax
import jax.numpy as jnp
from jax.experimental import pallas as pl
from jax.experimental.pallas import tpu as pltpu

BN_EPS = 1e-5
TILE_M = 512   # patch rows per grid step (review: 512-1024 hits ~85%+ of the
               # mem-bound roofline); VMEM limit is set explicitly below.


def _round_up(x, m):
    return ((x + m - 1) // m) * m


def _vmem_limit(working_set_bytes):
    """Explicit scoped-VMEM limit: 2x headroom over the double-buffered working
    set, clamped to [32 MiB, 48 MiB] (<= v7x's 64 MiB physical VMEM)."""
    return int(min(max(2 * working_set_bytes + (8 << 20), 32 << 20), 48 << 20))


def _choose_tm(m, bytes_per_row):
    """Pick (tm, mp) for the M-tiled conv matmul: as large as VMEM allows
    (<= TILE_M), but with >=2 grid steps when m >= 256 so v7x's second
    TensorCore gets work on the 'parallel' axis."""
    m128 = _round_up(m, 128)
    tm = min(TILE_M, m128)
    while tm > 128 and 2 * tm * bytes_per_row > (40 << 20):   # double-buffered
        tm = _round_up(tm // 2, 128)
    if m128 >= 256 and m128 // tm < 2:
        tm = _round_up(m128 // 2, 128)
    mp = _round_up(m, tm)
    return tm, mp


# ---------------------------------------------------------------------------
# Pallas kernels
# ---------------------------------------------------------------------------
def _conv_mm_kernel(p_ref, w_ref, b_ref, o_ref, *, apply_relu):
    """Fused conv-as-matmul tile (stride > 1 path): (patches @ W) + bias [+ReLU].

    p_ref: (TM, K) bf16    w_ref: (K, Cout) bf16    b_ref: (1, Cout) f32
    o_ref: (TM, Cout) bf16 or f32
    """
    acc = jnp.dot(p_ref[...], w_ref[...], preferred_element_type=jnp.float32)
    acc = acc + b_ref[...]
    if apply_relu:
        acc = jnp.maximum(acc, 0.0)
    o_ref[...] = acc.astype(o_ref.dtype)


def _conv_s1_kernel(x_ref, w_ref, b_ref, o_ref, *, kh, ow, apply_relu):
    """Stride-1 conv: accumulate kh row-tap matmuls over a flattened slab.

    A row-tap shift of di is a contiguous +di*OW row shift of the flattened
    (Hp*OW, kw*Cin) slab, so every dot stays 2-D and no kh*kw im2col exists.

    x_ref: (1, Hp*OW, kw*Cin) bf16   w_ref: (kh, kw*Cin, Cout) bf16
    b_ref: (1, Cout) f32             o_ref: (1, OH*OW, Cout)
    """
    m = o_ref.shape[1]
    acc = None
    for di in range(kh):                       # kh is a small static int: unrolled
        tap = jnp.dot(x_ref[0, di * ow: di * ow + m, :], w_ref[di],
                      preferred_element_type=jnp.float32)
        acc = tap if acc is None else acc + tap
    acc = acc + b_ref[...]
    if apply_relu:
        acc = jnp.maximum(acc, 0.0)
    o_ref[0] = acc.astype(o_ref.dtype)


def _avgpool_kernel(p00_ref, p01_ref, p10_ref, p11_ref, o_ref):
    """AvgPool2d(4,2,1): the 16 taps are the {+0,+1} shifted slices of the 4
    even/odd parity planes of the padded feature map.

    plane refs: (1, H2, W2, C) bf16    o_ref: (1, PH, PW, C) f32
    """
    ph, pw, c = o_ref.shape[1], o_ref.shape[2], o_ref.shape[3]
    acc = jnp.zeros((ph, pw, c), jnp.float32)
    for plane in (p00_ref, p01_ref, p10_ref, p11_ref):
        for di in (0, 1):
            for dj in (0, 1):
                acc = acc + plane[0, di:di + ph, dj:dj + pw, :].astype(jnp.float32)
    o_ref[0] = acc * (1.0 / 16.0)              # count_include_pad=True


# ---------------------------------------------------------------------------
# Host-side glue (bf16 layout / padding only; all FLOPs live in the kernels)
# ---------------------------------------------------------------------------
def _im2col(x_nhwc, kh, kw, stride, pad):
    """Extract conv patches: (N*OH*OW, KH*KW*C) in the INPUT dtype (bf16)."""
    x = jnp.pad(x_nhwc, ((0, 0), (pad, pad), (pad, pad), (0, 0)))
    n, hp, wp, c = x.shape
    oh = (hp - kh) // stride + 1
    ow = (wp - kw) // stride + 1
    cols = [x[:, i:i + stride * oh:stride, j:j + stride * ow:stride, :]
            for i in range(kh) for j in range(kw)]
    patches = jnp.concatenate(cols, axis=-1)          # (N, OH, OW, KH*KW*C)
    return patches.reshape(n * oh * ow, kh * kw * c), oh, ow


def _conv_im2col(x_bf, w_hwio, bias, *, stride, pad, relu, out_dtype):
    """Conv2d (+folded BN) (+ReLU) via an M-tiled Pallas MXU matmul (stride>1)."""
    kh, kw, cin, cout = w_hwio.shape
    n = x_bf.shape[0]
    patches, oh, ow = _im2col(x_bf, kh, kw, stride, pad)   # bf16, true (un-padded) K
    m, k = patches.shape
    w2 = w_hwio.reshape(kh * kw * cin, cout).astype(jnp.bfloat16)
    b2 = bias.astype(jnp.float32)[None, :]

    out_isz = jnp.dtype(out_dtype).itemsize
    tm, mp = _choose_tm(m, k * 2 + cout * out_isz)
    p_pad = jnp.pad(patches, ((0, mp - m), (0, 0)))        # M pad only

    ws = (2 * tm * k * 2 + 2 * k * cout * 2 + 2 * tm * cout * out_isz
          + 2 * cout * 4)
    out = pl.pallas_call(
        functools.partial(_conv_mm_kernel, apply_relu=relu),
        out_shape=jax.ShapeDtypeStruct((mp, cout), out_dtype),
        grid=(mp // tm,),
        in_specs=[
            pl.BlockSpec((tm, k), lambda i: (i, 0)),       # patches: streamed
            pl.BlockSpec((k, cout), lambda i: (0, 0)),     # weight: resident
            pl.BlockSpec((1, cout), lambda i: (0, 0)),     # bias: resident
        ],
        out_specs=pl.BlockSpec((tm, cout), lambda i: (i, 0)),
        compiler_params=pltpu.CompilerParams(
            dimension_semantics=("parallel",),             # 2 TCs on v7x
            vmem_limit_bytes=_vmem_limit(ws)),
    )(p_pad, w2, b2)
    # TODO(synk): very large layers (K*Cout weight exceeding the VMEM budget)
    #             would need Cout/K grid axes (256-aligned on v6e/v7x, 128 on
    #             v5e) and a single-buffered resident weight (pl.Buffered(1));
    #             not needed at these sizes.
    return out[:m].reshape(n, oh, ow, cout)


def _conv_s1(x_bf, w_hwio, bias, *, pad, relu, out_dtype):
    """Stride-1 conv via width-only im2col + in-kernel row-tap accumulation."""
    kh, kw, cin, cout = w_hwio.shape
    n, h, w_, _ = x_bf.shape
    hp, wp = h + 2 * pad, w_ + 2 * pad
    oh, ow = hp - kh + 1, wp - kw + 1
    xp = jnp.pad(x_bf, ((0, 0), (pad, pad), (pad, pad), (0, 0)))
    # Width-only im2col (kw x inflation, not kh*kw x), then flatten rows so a
    # row-tap shift di becomes a contiguous +di*OW shift inside the kernel.
    xw = jnp.concatenate([xp[:, :, j:j + ow, :] for j in range(kw)], axis=-1)
    xw = xw.reshape(n, hp * ow, kw * cin)
    wk = w_hwio.reshape(kh, kw * cin, cout).astype(jnp.bfloat16)
    b2 = bias.astype(jnp.float32)[None, :]

    k = kw * cin
    out_isz = jnp.dtype(out_dtype).itemsize
    ws = (2 * hp * ow * k * 2 + 2 * kh * k * cout * 2
          + 2 * oh * ow * cout * out_isz + 2 * cout * 4)
    out = pl.pallas_call(
        functools.partial(_conv_s1_kernel, kh=kh, ow=ow, apply_relu=relu),
        out_shape=jax.ShapeDtypeStruct((n, oh * ow, cout), out_dtype),
        grid=(n,),
        in_specs=[
            pl.BlockSpec((1, hp * ow, k), lambda i: (i, 0, 0)),   # slab: streamed
            pl.BlockSpec((kh, k, cout), lambda i: (0, 0, 0)),     # weight: resident
            pl.BlockSpec((1, cout), lambda i: (0, 0)),            # bias: resident
        ],
        out_specs=pl.BlockSpec((1, oh * ow, cout), lambda i: (i, 0, 0)),
        compiler_params=pltpu.CompilerParams(
            dimension_semantics=("parallel",),                    # 2 TCs on v7x
            vmem_limit_bytes=_vmem_limit(ws)),
    )(xw, wk, b2)
    return out.reshape(n, oh, ow, cout)


def _fused_conv2d(x_nhwc, w_hwio, bias, *, stride, pad, relu, out_dtype):
    x_bf = x_nhwc.astype(jnp.bfloat16)        # cast BEFORE im2col/padding (HBM bytes)
    kh, kw, cin, _ = w_hwio.shape
    if stride == 1:
        n, h, w_, _ = x_nhwc.shape
        hp = h + 2 * pad
        ow = w_ + 2 * pad - kw + 1
        if hp * ow * kw * cin * 2 <= (24 << 20):   # per-batch slab must fit VMEM
            return _conv_s1(x_bf, w_hwio, bias, pad=pad, relu=relu,
                            out_dtype=out_dtype)
        # TODO(synk): tile huge stride-1 images over output-row blocks with a
        #             (kh-1)-row halo (manual DMA); falls back to im2col here.
    return _conv_im2col(x_bf, w_hwio, bias, stride=stride, pad=pad, relu=relu,
                        out_dtype=out_dtype)


def _avg_pool_4x4_s2_p1(y_nhwc):
    """nn.AvgPool2d(kernel_size=4, stride=2, padding=1), count_include_pad=True."""
    n, h, w, c = y_nhwc.shape
    ph, pw = (h - 2) // 2 + 1, (w - 2) // 2 + 1
    # Pad by 1 (plus up to 1 extra zero row/col so spatial dims are even; the
    # extra row/col is never read by any pooling window).
    hpe, wpe = _round_up(h + 2, 2), _round_up(w + 2, 2)
    yp = jnp.pad(y_nhwc, ((0, 0), (1, hpe - h - 1), (1, wpe - w - 1), (0, 0)))
    # Even/odd parity planes  P[a,b][i,j] = yp[2i+a, 2j+b]: pure re-layout
    # (~1x feature-map bytes) instead of a 16x tap stack through HBM.
    planes = [yp[:, a::2, b::2, :] for a in (0, 1) for b in (0, 1)]
    h2, w2 = hpe // 2, wpe // 2

    ws = 4 * 2 * (h2 * w2 * c * 2) + 2 * (ph * pw * c * 4)
    plane_spec = pl.BlockSpec((1, h2, w2, c), lambda i: (i, 0, 0, 0))
    out = pl.pallas_call(
        _avgpool_kernel,
        out_shape=jax.ShapeDtypeStruct((n, ph, pw, c), jnp.float32),
        grid=(n,),
        in_specs=[plane_spec] * 4,
        out_specs=pl.BlockSpec((1, ph, pw, c), lambda i: (i, 0, 0, 0)),
        compiler_params=pltpu.CompilerParams(
            dimension_semantics=("parallel",),
            vmem_limit_bytes=_vmem_limit(ws)),
    )(*planes)
    # TODO(synk): for very large feature maps, tile the planes over channel /
    #             batch-row blocks instead of one whole-plane block per batch.
    return out


# ---------------------------------------------------------------------------
# ConvLayer: params + forward (eval mode)
# ---------------------------------------------------------------------------
def init_conv_layer(key, *, in_channels, out_channels, kernel_size, stride,
                    padding, leaky=True, b_norm=True, **_unused):
    kw_key, kg, kb_, km, kv = jax.random.split(key, 5)
    fan_in = in_channels * kernel_size * kernel_size
    fan_out = out_channels * kernel_size * kernel_size
    if leaky:
        gain = (2.0 / (1.0 + 0.2 ** 2)) ** 0.5      # kaiming_normal_(a=0.2)
        std = gain / (fan_in ** 0.5)
    else:
        std = (2.0 / (fan_in + fan_out)) ** 0.5     # xavier_normal_
    w = std * jax.random.normal(
        kw_key, (kernel_size, kernel_size, in_channels, out_channels), jnp.float32)
    b = jnp.zeros((out_channels,), jnp.float32)     # nn.init.constant_(bias, 0)
    params = {"w": w, "b": b}
    if b_norm:
        # Eval-mode BatchNorm2d state.  Non-trivial values exercise the general
        # per-channel fold (fresh PyTorch init would be gamma=1, beta=0,
        # mean=0, var=1).
        params["bn_gamma"] = 1.0 + 0.5 * jax.random.uniform(
            kg, (out_channels,), minval=-1.0, maxval=1.0)
        params["bn_beta"] = 0.1 * jax.random.normal(kb_, (out_channels,))
        params["bn_mean"] = 0.1 * jax.random.normal(km, (out_channels,))
        params["bn_var"] = 1.0 + 0.5 * jax.random.uniform(
            kv, (out_channels,), minval=-1.0, maxval=1.0)
    return params


def conv_layer_forward(x_nchw, params, cfg):
    """Eval-mode ConvLayer: conv -> [BN] -> [ReLU] -> dropout(id) -> [avgpool]."""
    stride, pad = cfg["stride"], cfg["padding"]
    x = jnp.transpose(x_nchw, (0, 2, 3, 1))          # NCHW -> NHWC

    # Fold eval-mode BatchNorm (per-channel affine) into the conv weight/bias.
    w, b = params["w"], params["b"]
    if cfg["b_norm"]:
        scale = params["bn_gamma"] * jax.lax.rsqrt(params["bn_var"] + BN_EPS)
        shift = params["bn_beta"] - params["bn_mean"] * scale
        w = w * scale                                # broadcast over Cout axis
        b = b * scale + shift

    # Keep the conv->pool intermediate in bf16 (halves conv writeback and pool
    # read bytes); emit f32 directly when the conv output IS the module output.
    out_dtype = jnp.bfloat16 if cfg["apool"] else jnp.float32
    y = _fused_conv2d(x, w, b, stride=stride, pad=pad, relu=cfg["leaky"],
                      out_dtype=out_dtype)

    # nn.Dropout2d: identity in eval mode / p=0.
    # TODO(synk): train-mode Dropout2d (stochastic channel masking) and
    #             train-mode BatchNorm (batch statistics) not implemented.

    if cfg["apool"]:
        y = _avg_pool_4x4_s2_p1(y)
    return jnp.transpose(y, (0, 3, 1, 2))            # NHWC -> NCHW (f32)


# ---------------------------------------------------------------------------
# Pure-JAX reference (f32) for a sanity check
# ---------------------------------------------------------------------------
def _ref_conv_layer(x_nchw, params, cfg):
    s, p = cfg["stride"], cfg["padding"]
    y = jax.lax.conv_general_dilated(
        x_nchw, params["w"], window_strides=(s, s),
        padding=[(p, p), (p, p)],
        dimension_numbers=("NCHW", "HWIO", "NCHW"))
    y = y + params["b"][None, :, None, None]
    if cfg["b_norm"]:
        scale = params["bn_gamma"] * jax.lax.rsqrt(params["bn_var"] + BN_EPS)
        shift = params["bn_beta"] - params["bn_mean"] * scale
        y = y * scale[None, :, None, None] + shift[None, :, None, None]
    if cfg["leaky"]:
        y = jnp.maximum(y, 0.0)
    if cfg["apool"]:
        y = jax.lax.reduce_window(
            y, 0.0, jax.lax.add, (1, 1, 4, 4), (1, 1, 2, 2),
            padding=((0, 0), (0, 0), (1, 1), (1, 1))) / 16.0
    return y


if __name__ == "__main__":
    key = jax.random.PRNGKey(0)
    k1, k2, kx = jax.random.split(key, 3)
    x = jax.random.normal(kx, (2, 4, 16, 16), jnp.float32)

    # Config A: stride-2 conv + BN + ReLU + dropout(identity) + AvgPool(4,2,1).
    cfg_a = dict(in_channels=4, out_channels=32, kernel_size=4, stride=2,
                 padding=1, dropout_rate=0.0, leaky=True, b_norm=True, apool=True)
    params_a = init_conv_layer(k1, **cfg_a)
    y_a = conv_layer_forward(x, params_a, cfg_a)

    # Config B: stride-1 conv (in-kernel row-tap path), no BN/ReLU/pool.
    cfg_b = dict(in_channels=4, out_channels=8, kernel_size=3, stride=1,
                 padding=1, dropout_rate=0.0, leaky=False, b_norm=False, apool=False)
    params_b = init_conv_layer(k2, **cfg_b)
    y_b = conv_layer_forward(x, params_b, cfg_b)

    jax.block_until_ready((y_a, y_b))
    assert y_a.shape == (2, 32, 4, 4), y_a.shape
    assert y_b.shape == (2, 8, 16, 16), y_b.shape
    assert bool(jnp.all(jnp.isfinite(y_a))) and bool(jnp.all(jnp.isfinite(y_b)))

    # Loose tolerance: the Pallas path uses bf16 operands/intermediates
    # (f32 accumulation everywhere).
    ref_a = _ref_conv_layer(x, params_a, cfg_a)
    ref_b = _ref_conv_layer(x, params_b, cfg_b)
    assert bool(jnp.allclose(y_a, ref_a, rtol=1e-1, atol=2e-1)), \
        float(jnp.max(jnp.abs(y_a - ref_a)))
    assert bool(jnp.allclose(y_b, ref_b, rtol=1e-1, atol=2e-1)), \
        float(jnp.max(jnp.abs(y_b - ref_b)))

    print("KERNEL_OK")
</pallas_src>

<mosaic_0001>
module attributes {stable_mosaic.version = 11 : i64} {
  func.func @_conv_mm_kernel(%arg0: i32, %arg1: memref<128x64xbf16, #tpu.memory_space<vmem>>, %arg2: memref<64x32xbf16, #tpu.memory_space<vmem>>, %arg3: memref<1x32xf32, #tpu.memory_space<vmem>>, %arg4: memref<128x32xbf16, #tpu.memory_space<vmem>>) attributes {dimension_semantics = [#tpu.dimension_semantics<parallel>], iteration_bounds = array<i64: 1>, scalar_prefetch = 0 : i64, scratch_operands = 0 : i64, tpu.core_type = #tpu.core_type<tc>, window_params = [{transform_indices = @transform_0, window_bounds = array<i64: 128, 64>}, {pipeline_mode = #tpu.pipeline_mode<synchronous>, transform_indices = @transform_1, window_bounds = array<i64: 64, 32>}, {pipeline_mode = #tpu.pipeline_mode<synchronous>, transform_indices = @transform_2, window_bounds = array<i64: 1, 32>}, {transform_indices = @transform_3, window_bounds = array<i64: 128, 32>}]} {
    %c0 = arith.constant 0 : index
    %c0_0 = arith.constant 0 : index
    %0 = vector.load %arg1[%c0, %c0_0] : memref<128x64xbf16, #tpu.memory_space<vmem>>, vector<128x64xbf16>
    %c0_1 = arith.constant 0 : index
    %c0_2 = arith.constant 0 : index
    %1 = vector.load %arg2[%c0_1, %c0_2] : memref<64x32xbf16, #tpu.memory_space<vmem>>, vector<64x32xbf16>
    %cst = arith.constant dense<0.000000e+00> : vector<128x32xf32>
    %2 = tpu.matmul %0, %1, %cst {dimension_numbers = #tpu.dot_dimension_numbers<[1], [0], [0], [1], [0, 0, 1, 1], [], []>} : vector<128x64xbf16>, vector<64x32xbf16>, vector<128x32xf32> -> vector<128x32xf32>
    %c0_3 = arith.constant 0 : index
    %c0_4 = arith.constant 0 : index
    %3 = vector.load %arg3[%c0_3, %c0_4] : memref<1x32xf32, #tpu.memory_space<vmem>>, vector<1x32xf32>
    %4 = vector.broadcast %3 : vector<1x32xf32> to vector<128x32xf32>
    %5 = arith.addf %2, %4 : vector<128x32xf32>
    %cst_5 = arith.constant 0.000000e+00 : f32
    %6 = vector.broadcast %cst_5 : f32 to vector<128x32xf32>
    %7 = arith.maximumf %5, %6 : vector<128x32xf32>
    %8 = arith.truncf %7 : vector<128x32xf32> to vector<128x32xbf16>
    %c0_6 = arith.constant 0 : index
    %c0_7 = arith.constant 0 : index
    %9 = vector.load %arg4[%c0_6, %c0_7] : memref<128x32xbf16, #tpu.memory_space<vmem>>, vector<128x32xbf16>
    tpu.vector_store %arg4[%c0_6, %c0_7], %8 {strides = array<i32>} : memref<128x32xbf16, #tpu.memory_space<vmem>>, vector<128x32xbf16>,
    return
  }
  func.func @transform_0(%arg0: i32) -> (i32, i32) {
    %c0_i32 = arith.constant 0 : i32
    %c0_i32_0 = arith.constant 0 : i32
    return %arg0, %c0_i32 : i32, i32
  }
  func.func @transform_1(%arg0: i32) -> (i32, i32) {
    %c0_i32 = arith.constant 0 : i32
    %c0_i32_0 = arith.constant 0 : i32
    %c0_i32_1 = arith.constant 0 : i32
    return %c0_i32, %c0_i32_0 : i32, i32
  }
  func.func @transform_2(%arg0: i32) -> (i32, i32) {
    %c0_i32 = arith.constant 0 : i32
    %c0_i32_0 = arith.constant 0 : i32
    %c0_i32_1 = arith.constant 0 : i32
    return %c0_i32, %c0_i32_0 : i32, i32
  }
  func.func @transform_3(%arg0: i32) -> (i32, i32) {
    %c0_i32 = arith.constant 0 : i32
    %c0_i32_0 = arith.constant 0 : i32
    return %arg0, %c0_i32 : i32, i32
  }
}

</mosaic_0001>

<llo_original>
// kernel: tpu_custom_call.1
$region0: #{tpu_custom_call.1}
  #allocation0 [shape = 'u32[]', space=smem, size = 0x4, offset = 0x4, fixed_abs, tag = 'smem constant byte address 0x4 - core index']
  #allocation1 [shape = 'u32[144,128]{1,0:T(1,128)}', space=vmem, size = 0x12000, scoped, tag = 'internal scratch']
  %s0 = inlined_call_operand.vmem [shape: bf16[128,64], index: 0, kind: input, shape index: {}]
  %s1 = inlined_call_operand.vmem [shape: bf16[64,32], index: 1, kind: input, shape index: {}]
  %s2 = inlined_call_operand.vmem [shape: f32[1,32], index: 2, kind: input, shape index: {}]
  %s3 = inlined_call_operand.vmem [shape: bf16[128,32], index: 3, kind: output, shape index: {}]
  %s4 = sld [smem:[#allocation0]]
  $region22: #{tpu_custom_call.1} parent=0
    _
  %s6 = ssub.s32 1, %s4
  %s7 = scalar_select 0, %s6, %s4
  // Predicated region
  $region2: #{tpu_custom_call.1} parent=0 // pred_check
    _
  $region3: #{tpu_custom_call.1} parent=0 // pred_check_branch
    %9 = sbr.rel (0) target = $region5
  $region4: #{tpu_custom_call.1} parent=0 // pred_region
    _
  $region5: #{tpu_custom_call.1} parent=0 // pred_fallthru
    _
  // Predicated region
  $region6: #{tpu_custom_call.1} parent=0 // pred_check
    _
  $region7: #{tpu_custom_call.1} parent=0 // pred_check_branch
    %11 = sbr.rel (0) target = $region9
  $region8: #{tpu_custom_call.1} parent=0 // pred_region
    _
  $region9: #{tpu_custom_call.1} parent=0 // pred_fallthru
    _
  // Predicated region
  $region10: #{tpu_custom_call.1} parent=0 // pred_check
    _
  $region11: #{tpu_custom_call.1} parent=0 // pred_check_branch
    %13 = sbr.rel (0) target = $region13
  $region12: #{tpu_custom_call.1} parent=0 // pred_region
    _
  $region13: #{tpu_custom_call.1} parent=0 // pred_fallthru
    _
  %v15 = vld [vmem:[%s0] sm:$0xf]
  %v16 = vld [vmem:[%s0 + $0x4] sm:$0xf]
  %v17 = vld [vmem:[%s0 + $0x8] sm:$0xf]
  %v18 = vld [vmem:[%s0 + $0xc] sm:$0xf]
  %v19 = vld [vmem:[%s0 + $0x10] sm:$0xf]
  %v20 = vld [vmem:[%s0 + $0x14] sm:$0xf]
  %v21 = vld [vmem:[%s0 + $0x18] sm:$0xf]
  %v22 = vld [vmem:[%s0 + $0x1c] sm:$0xf]
  %v23 = vld [vmem:[%s0 + $0x20] sm:$0xf]
  %v24 = vld [vmem:[%s0 + $0x24] sm:$0xf]
  %v25 = vld [vmem:[%s0 + $0x28] sm:$0xf]
  %v26 = vld [vmem:[%s0 + $0x2c] sm:$0xf]
  %v27 = vld [vmem:[%s0 + $0x30] sm:$0xf]
  %v28 = vld [vmem:[%s0 + $0x34] sm:$0xf]
  %v29 = vld [vmem:[%s0 + $0x38] sm:$0xf]
  %v30 = vld [vmem:[%s0 + $0x3c] sm:$0xf]
  %v31 = vld [vmem:[%s1] sm:$0xf]
  %v32 = vld [vmem:[%s1 + $0x4] sm:$0xf]
  %v33 = vld [vmem:[%s1 + $0x8] sm:$0xf]
  %v34 = vld [vmem:[%s1 + $0xc] sm:$0xf]
  %v35 = vld [vmem:[%s1 + $0x10] sm:$0xf]
  %v36 = vld [vmem:[%s1 + $0x14] sm:$0xf]
  %v37 = vld [vmem:[%s1 + $0x18] sm:$0xf]
  %v38 = vld [vmem:[%s1 + $0x1c] sm:$0xf]
  %v39 = vld [vmem:[%s2] sm:$0x1]
  %v41 = vlaneseq
  %v42 = vshrl.u32 %v41, 7
  %v43 = vsub.s32 0, %v42
  %v44 = vrot.slane %v39, %v43
  %v62 = vunpack.c.l.b16 %v15
  %v63 = vunpack.c.l.b16 %v16
  %v64 = vunpack.c.l.b16 %v17
  %v65 = vunpack.c.l.b16 %v18
  %v66 = vunpack.c.l.b16 %v19
  %v67 = vunpack.c.l.b16 %v20
  %v68 = vunpack.c.l.b16 %v21
  %v69 = vunpack.c.l.b16 %v22
  %v70 = vunpack.c.l.b16 %v23
  %v71 = vunpack.c.l.b16 %v24
  %v72 = vunpack.c.l.b16 %v25
  %v73 = vunpack.c.l.b16 %v26
  %v74 = vunpack.c.l.b16 %v27
  %v75 = vunpack.c.l.b16 %v28
  %v76 = vunpack.c.l.b16 %v29
  %v77 = vunpack.c.l.b16 %v30
  %v78 = vpack.c.b16 %v63, %v62
  %v79 = vpack.c.b16 %v65, %v64
  %v80 = vpack.c.b16 %v67, %v66
  %v81 = vpack.c.b16 %v69, %v68
  %v82 = vpack.c.b16 %v71, %v70
  %v83 = vpack.c.b16 %v73, %v72
  %v84 = vpack.c.b16 %v75, %v74
  %v85 = vpack.c.b16 %v77, %v76
  %v94 = vunpack.c.l.b16 %v31
  %v95 = vunpack.c.l.b16 %v32
  %v96 = vunpack.c.l.b16 %v33
  %v97 = vunpack.c.l.b16 %v34
  %v98 = vunpack.c.l.b16 %v35
  %v99 = vunpack.c.l.b16 %v36
  %v100 = vunpack.c.l.b16 %v37
  %v101 = vunpack.c.l.b16 %v38
  %v102 = vpack.c.b16 %v95, %v94
  %v103 = vpack.c.b16 %v97, %v96
  %v104 = vpack.c.b16 %v99, %v98
  %v105 = vpack.c.b16 %v101, %v100
  %vm110 = vcmask 523264
  %v112 = vsel %vm110, %v78, 0
  %v115 = vsel %vm110, %v79, 0
  %v118 = vsel %vm110, %v80, 0
  %v121 = vsel %vm110, %v81, 0
  %v124 = vsel %vm110, %v82, 0
  %v127 = vsel %vm110, %v83, 0
  %v130 = vsel %vm110, %v84, 0
  %v133 = vsel %vm110, %v85, 0
  %135 = vmatprep.subr.bf16.mxu0 0
  %136 = vmatpush1.bf16.msra.mxu0 0
  %137 = vmatprep.subr.bf16.mxu0 0
  %138 = vmatpush1.bf16.msra.mxu0 0
  %139 = vmatprep.subr.bf16.mxu0 0
  %140 = vmatpush1.bf16.msra.mxu0 0
  %141 = vmatprep.subr.bf16.mxu0 0
  %142 = vmatpush1.bf16.msra.mxu0 0
  %143 = vmatprep.subr.bf16.mxu0 0
  %144 = vmatpush1.bf16.msra.mxu0 %v105
  %145 = vmatprep.subr.bf16.mxu0 0
  %146 = vmatpush1.bf16.msra.mxu0 %v104
  %147 = vmatprep.subr.bf16.mxu0 0
  %148 = vmatpush1.bf16.msra.mxu0 %v103
  %149 = vmatprep.subr.bf16.mxu0 0
  %150 = vmatpush1.bf16.msra.mxu0 %v102
  %151 = vmatprep.subr.bf16.mxu0 0
  %152 = vmatpush2.bf16.msra.mxu0 0
  %153 = vmatprep.subr.bf16.mxu0 0
  %154 = vmatpush2.bf16.msra.mxu0 0
  %155 = vmatprep.subr.bf16.mxu0 0
  %156 = vmatpush2.bf16.msra.mxu0 0
  %157 = vmatprep.subr.bf16.mxu0 0
  %158 = vmatpush2.bf16.msra.mxu0 0
  %159 = vmatprep.subr.bf16.mxu0 0
  %160 = vmatpush2.bf16.msra.mxu0 0
  %161 = vmatprep.subr.bf16.mxu0 0
  %162 = vmatpush2.bf16.msra.mxu0 0
  %163 = vmatprep.subr.bf16.mxu0 0
  %164 = vmatpush2.bf16.msra.mxu0 0
  %165 = vmatprep.subr.bf16.mxu0 0
  %166 = vmatpush2.bf16.msra.mxu0 0
  %167 = vmatprep.mubr.bf16.mxu0 0
  %168 = vmatmul.mubr.bf16.gmra.mxu0 %v112
  %v169 = vpop.f32.mrf.mxu0
  %v170 = vadd.f32 %v44, %v169
  %v171 = vpop.f32.mrf.mxu0
  %v172 = vpop.f32.mrf.mxu0
  %v173 = vadd.f32 %v44, %v172
  %v174 = vpop.f32.mrf.mxu0
  %175 = vmatprep.mubr.bf16.mxu0 0
  %176 = vmatmul.mubr.bf16.gmra.mxu0 %v115
  %v177 = vpop.f32.mrf.mxu0
  %v178 = vadd.f32 %v44, %v177
  %v179 = vpop.f32.mrf.mxu0
  %v180 = vpop.f32.mrf.mxu0
  %v181 = vadd.f32 %v44, %v180
  %v182 = vpop.f32.mrf.mxu0
  %183 = vmatprep.mubr.bf16.mxu0 0
  %184 = vmatmul.mubr.bf16.gmra.mxu0 %v118
  %v185 = vpop.f32.mrf.mxu0
  %v186 = vadd.f32 %v44, %v185
  %v187 = vpop.f32.mrf.mxu0
  %v188 = vpop.f32.mrf.mxu0
  %v189 = vadd.f32 %v44, %v188
  %v190 = vpop.f32.mrf.mxu0
  %191 = vmatprep.mubr.bf16.mxu0 0
  %192 = vmatmul.mubr.bf16.gmra.mxu0 %v121
  %v193 = vpop.f32.mrf.mxu0
  %v194 = vadd.f32 %v44, %v193
  %v195 = vpop.f32.mrf.mxu0
  %v196 = vpop.f32.mrf.mxu0
  %v197 = vadd.f32 %v44, %v196
  %v198 = vpop.f32.mrf.mxu0
  %199 = vmatprep.mubr.bf16.mxu0 0
  %200 = vmatmul.mubr.bf16.gmra.mxu0 %v124
  %v201 = vpop.f32.mrf.mxu0
  %v202 = vadd.f32 %v44, %v201
  %v203 = vpop.f32.mrf.mxu0
  %v204 = vpop.f32.mrf.mxu0
  %v205 = vadd.f32 %v44, %v204
  %v206 = vpop.f32.mrf.mxu0
  %207 = vmatprep.mubr.bf16.mxu0 0
  %208 = vmatmul.mubr.bf16.gmra.mxu0 %v127
  %v209 = vpop.f32.mrf.mxu0
  %v210 = vadd.f32 %v44, %v209
  %v211 = vpop.f32.mrf.mxu0
  %v212 = vpop.f32.mrf.mxu0
  %v213 = vadd.f32 %v44, %v212
  %v214 = vpop.f32.mrf.mxu0
  %215 = vmatprep.mubr.bf16.mxu0 0
  %216 = vmatmul.mubr.bf16.gmra.mxu0 %v130
  %v217 = vpop.f32.mrf.mxu0
  %v218 = vadd.f32 %v44, %v217
  %v219 = vpop.f32.mrf.mxu0
  %v220 = vpop.f32.mrf.mxu0
  %v221 = vadd.f32 %v44, %v220
  %v222 = vpop.f32.mrf.mxu0
  %223 = vmatprep.mubr.bf16.mxu0 0
  %224 = vmatmul.mubr.bf16.gmra.mxu0 %v133
  %v225 = vpop.f32.mrf.mxu0
  %v226 = vadd.f32 %v44, %v225
  %v227 = vpop.f32.mrf.mxu0
  %v228 = vpop.f32.mrf.mxu0
  %v229 = vadd.f32 %v44, %v228
  %v230 = vpop.f32.mrf.mxu0
  %231 = vdwg.mxu0
  %v232 = vmax.f32 %v170, 0.0
  %v233 = vmax.f32 %v173, 0.0
  %v234 = vmax.f32 %v178, 0.0
  %v235 = vmax.f32 %v181, 0.0
  %v236 = vmax.f32 %v186, 0.0
  %v237 = vmax.f32 %v189, 0.0
  %v238 = vmax.f32 %v194, 0.0
  %v239 = vmax.f32 %v197, 0.0
  %v240 = vmax.f32 %v202, 0.0
  %v241 = vmax.f32 %v205, 0.0
  %v242 = vmax.f32 %v210, 0.0
  %v243 = vmax.f32 %v213, 0.0
  %v244 = vmax.f32 %v218, 0.0
  %v245 = vmax.f32 %v221, 0.0
  %v246 = vmax.f32 %v226, 0.0
  %v247 = vmax.f32 %v229, 0.0
  %v248 = vpack.c.bf16 %v233, %v232
  %v249 = vpack.c.bf16 %v235, %v234
  %v250 = vpack.c.bf16 %v237, %v236
  %v251 = vpack.c.bf16 %v239, %v238
  %v252 = vpack.c.bf16 %v241, %v240
  %v253 = vpack.c.bf16 %v243, %v242
  %v254 = vpack.c.bf16 %v245, %v244
  %v255 = vpack.c.bf16 %v247, %v246
  %v264 = vunpack.c.l.b16 %v248
  %v265 = vunpack.c.h.b16 %v248
  %v266 = vunpack.c.l.b16 %v249
  %v267 = vunpack.c.h.b16 %v249
  %v268 = vunpack.c.l.b16 %v250
  %v269 = vunpack.c.h.b16 %v250
  %v270 = vunpack.c.l.b16 %v251
  %v271 = vunpack.c.h.b16 %v251
  %v272 = vunpack.c.l.b16 %v252
  %v273 = vunpack.c.h.b16 %v252
  %v274 = vunpack.c.l.b16 %v253
  %v275 = vunpack.c.h.b16 %v253
  %v276 = vunpack.c.l.b16 %v254
  %v277 = vunpack.c.h.b16 %v254
  %v278 = vunpack.c.l.b16 %v255
  %v279 = vunpack.c.h.b16 %v255
  %v280 = vpack.c.b16 %v264, %v264
  %v281 = vpack.c.b16 %v265, %v265
  %v282 = vpack.c.b16 %v266, %v266
  %v283 = vpack.c.b16 %v267, %v267
  %v284 = vpack.c.b16 %v268, %v268
  %v285 = vpack.c.b16 %v269, %v269
  %v286 = vpack.c.b16 %v270, %v270
  %v287 = vpack.c.b16 %v271, %v271
  %v288 = vpack.c.b16 %v272, %v272
  %v289 = vpack.c.b16 %v273, %v273
  %v290 = vpack.c.b16 %v274, %v274
  %v291 = vpack.c.b16 %v275, %v275
  %v292 = vpack.c.b16 %v276, %v276
  %v293 = vpack.c.b16 %v277, %v277
  %v294 = vpack.c.b16 %v278, %v278
  %v295 = vpack.c.b16 %v279, %v279
  %vm312 = vcmask 257024
  %313 = vst.msk [vmem:[%s3] sm:$0xf] %vm312, %v280
  %314 = vst.msk [vmem:[%s3 + $0x4] sm:$0xf] %vm312, %v281
  %315 = vst.msk [vmem:[%s3 + $0x8] sm:$0xf] %vm312, %v282
  %316 = vst.msk [vmem:[%s3 + $0xc] sm:$0xf] %vm312, %v283
  %317 = vst.msk [vmem:[%s3 + $0x10] sm:$0xf] %vm312, %v284
  %318 = vst.msk [vmem:[%s3 + $0x14] sm:$0xf] %vm312, %v285
  %319 = vst.msk [vmem:[%s3 + $0x18] sm:$0xf] %vm312, %v286
  %320 = vst.msk [vmem:[%s3 + $0x1c] sm:$0xf] %vm312, %v287
  %321 = vst.msk [vmem:[%s3 + $0x20] sm:$0xf] %vm312, %v288
  %322 = vst.msk [vmem:[%s3 + $0x24] sm:$0xf] %vm312, %v289
  %323 = vst.msk [vmem:[%s3 + $0x28] sm:$0xf] %vm312, %v290
  %324 = vst.msk [vmem:[%s3 + $0x2c] sm:$0xf] %vm312, %v291
  %325 = vst.msk [vmem:[%s3 + $0x30] sm:$0xf] %vm312, %v292
  %326 = vst.msk [vmem:[%s3 + $0x34] sm:$0xf] %vm312, %v293
  %327 = vst.msk [vmem:[%s3 + $0x38] sm:$0xf] %vm312, %v294
  %328 = vst.msk [vmem:[%s3 + $0x3c] sm:$0xf] %vm312, %v295
  // Predicated region
  $region14: #{tpu_custom_call.1} parent=0 // pred_check
    _
  $region15: #{tpu_custom_call.1} parent=0 // pred_check_branch
    %330 = sbr.rel (0) target = $region17
  $region16: #{tpu_custom_call.1} parent=0 // pred_region
    _
  $region17: #{tpu_custom_call.1} parent=0 // pred_fallthru
    _
  // Predicated region
  $region18: #{tpu_custom_call.1} parent=0 // pred_check
    _
  $region19: #{tpu_custom_call.1} parent=0 // pred_check_branch
    %332 = sbr.rel (0) target = $region21
  $region20: #{tpu_custom_call.1} parent=0 // pred_region
    _
  $region21: #{tpu_custom_call.1} parent=0 // pred_fallthru
    _

</llo_original>
